<compile_context>
chip_gen: v5e
topology: v5e:2x2
jax: 0.10.0
libtpu: 0.0.40
codegen_flags: <defaults>
</compile_context>

<pallas_src>
import functools

import jax
import jax.numpy as jnp
from jax import lax
from jax.experimental import pallas as pl
from jax.experimental.pallas import tpu as pltpu


# ---------------------------------------------------------------------------
# Helpers
# ---------------------------------------------------------------------------
_VMEM_LIMIT = None


def _vmem_limit_bytes():
    """Generation-gated VMEM budget (v5e/v6e: 128 MiB physical, v7x: 64 MiB)."""
    global _VMEM_LIMIT
    if _VMEM_LIMIT is None:
        try:
            cap = int(getattr(pltpu.get_tpu_info(), "vmem_capacity_bytes",
                              64 * 1024 * 1024))
        except Exception:
            cap = 64 * 1024 * 1024
        _VMEM_LIMIT = (96 * 1024 * 1024 if cap >= 128 * 1024 * 1024
                       else 48 * 1024 * 1024)
    return _VMEM_LIMIT


def _pick_tile(dim, target, align):
    """Largest tile <= target dividing `dim` and multiple of `align`
    (falls back to the full dimension, always a legal block size)."""
    if dim <= target:
        return dim
    t = (min(target, dim) // align) * align
    while t >= align:
        if dim % t == 0:
            return t
        t -= align
    return dim
# TODO(synk): non-divisible shapes (e.g. N=197 ViT+CLS) should be padded to the
# next (8,128) multiple with masked tails instead of falling back to one block.


# ---------------------------------------------------------------------------
# Kernel 1: fused qkv projection  q,k,v = x @ Wq, x @ Wk, x @ Wv
#   grid = (M/tm, C/tn, K/tk); x block loaded once per step, three bf16 MXU
#   dots into three f32 accumulators; init/finalize on the k axis.
# ---------------------------------------------------------------------------
def _qkv_kernel(x_ref, wq_ref, wk_ref, wv_ref, q_ref, k_ref, v_ref,
                accq_ref, acck_ref, accv_ref):
    @pl.when(pl.program_id(2) == 0)
    def _():
        accq_ref[...] = jnp.zeros_like(accq_ref)
        acck_ref[...] = jnp.zeros_like(acck_ref)
        accv_ref[...] = jnp.zeros_like(accv_ref)

    x = x_ref[...]                                   # bf16 operands, f32 accum
    accq_ref[...] += jnp.dot(x, wq_ref[...], preferred_element_type=jnp.float32)
    acck_ref[...] += jnp.dot(x, wk_ref[...], preferred_element_type=jnp.float32)
    accv_ref[...] += jnp.dot(x, wv_ref[...], preferred_element_type=jnp.float32)

    @pl.when(pl.program_id(2) == pl.num_programs(2) - 1)
    def _():
        q_ref[...] = accq_ref[...].astype(q_ref.dtype)
        k_ref[...] = acck_ref[...].astype(k_ref.dtype)
        v_ref[...] = accv_ref[...].astype(v_ref.dtype)


def qkv_linear(x2d, wq, wk, wv, *, out_dtype, tm=512, tn=512, tk=1024):
    """x2d: (M, K) bf16; wq/wk/wv: (K, C) bf16 -> (q, k, v), each (M, C)."""
    M, K = x2d.shape
    OUT = wq.shape[1]
    tm = _pick_tile(M, tm, 8)
    tn = _pick_tile(OUT, tn, 128)
    tk = _pick_tile(K, tk, 128)
    grid = (M // tm, OUT // tn, K // tk)

    x_spec = pl.BlockSpec((tm, tk), lambda i, j, k: (i, k))
    w_spec = pl.BlockSpec((tk, tn), lambda i, j, k: (k, j))
    o_spec = pl.BlockSpec((tm, tn), lambda i, j, k: (i, j))
    o_sds = jax.ShapeDtypeStruct((M, OUT), out_dtype)

    return pl.pallas_call(
        _qkv_kernel,
        out_shape=(o_sds, o_sds, o_sds),
        grid=grid,
        in_specs=[x_spec, w_spec, w_spec, w_spec],
        out_specs=(o_spec, o_spec, o_spec),
        scratch_shapes=[pltpu.VMEM((tm, tn), jnp.float32)] * 3,
        compiler_params=pltpu.CompilerParams(
            dimension_semantics=("parallel", "parallel", "arbitrary"),
            vmem_limit_bytes=_vmem_limit_bytes()),
    )(x2d, wq, wk, wv)


# ---------------------------------------------------------------------------
# Kernel 2: tiled dense layer  y = x @ W (+ b)   (used for the output proj)
# ---------------------------------------------------------------------------
def _linear_kernel(x_ref, w_ref, o_ref, acc_ref):
    @pl.when(pl.program_id(2) == 0)
    def _():
        acc_ref[...] = jnp.zeros_like(acc_ref)

    acc_ref[...] += jnp.dot(x_ref[...], w_ref[...],
                            preferred_element_type=jnp.float32)

    @pl.when(pl.program_id(2) == pl.num_programs(2) - 1)
    def _():
        o_ref[...] = acc_ref[...].astype(o_ref.dtype)


def _linear_bias_kernel(x_ref, w_ref, b_ref, o_ref, acc_ref):
    @pl.when(pl.program_id(2) == 0)
    def _():
        acc_ref[...] = jnp.zeros_like(acc_ref)

    acc_ref[...] += jnp.dot(x_ref[...], w_ref[...],
                            preferred_element_type=jnp.float32)

    @pl.when(pl.program_id(2) == pl.num_programs(2) - 1)
    def _():
        o_ref[...] = (acc_ref[...] + b_ref[...]).astype(o_ref.dtype)


def linear(x2d, w, b=None, *, out_dtype=None, tm=512, tn=512, tk=1024):
    """x2d: (M, K), w: (K, OUT) bf16, b: (OUT,) f32 or None -> (M, OUT)."""
    M, K = x2d.shape
    OUT = w.shape[1]
    out_dtype = x2d.dtype if out_dtype is None else out_dtype
    tm = _pick_tile(M, tm, 8)
    tn = _pick_tile(OUT, tn, 128)
    tk = _pick_tile(K, tk, 128)
    grid = (M // tm, OUT // tn, K // tk)

    in_specs = [
        pl.BlockSpec((tm, tk), lambda i, j, k: (i, k)),
        pl.BlockSpec((tk, tn), lambda i, j, k: (k, j)),
    ]
    args = [x2d, w]
    kernel = _linear_kernel
    if b is not None:
        in_specs.append(pl.BlockSpec((1, tn), lambda i, j, k: (0, j)))
        args.append(b.reshape(1, OUT).astype(jnp.float32))   # bias added in f32
        kernel = _linear_bias_kernel

    return pl.pallas_call(
        kernel,
        out_shape=jax.ShapeDtypeStruct((M, OUT), out_dtype),
        grid=grid,
        in_specs=in_specs,
        out_specs=pl.BlockSpec((tm, tn), lambda i, j, k: (i, j)),
        scratch_shapes=[pltpu.VMEM((tm, tn), jnp.float32)],
        compiler_params=pltpu.CompilerParams(
            dimension_semantics=("parallel", "parallel", "arbitrary"),
            vmem_limit_bytes=_vmem_limit_bytes()),
    )(*args)


# ---------------------------------------------------------------------------
# Kernel 3: flash-style multi-head attention over lane-dense (B, N, C) q/k/v.
#   grid = (B, Nq_tiles, Nkv_tiles): B / q tiles "parallel", kv "arbitrary".
#   Softmax scale already folded into W_q.  Online softmax with f32 scratch
#   (m, l per head as lane columns of a (tq, H) tile; per-head (tq, D) acc);
#   normalization deferred to the finalize; lane-dense (tq, C) output store.
# ---------------------------------------------------------------------------
def _attn_kernel(q_ref, k_ref, v_ref, o_ref, m_ref, l_ref, acc_ref, *,
                 num_heads, head_dim, mxu_dtype):
    ki = pl.program_id(2)

    @pl.when(ki == 0)
    def _():
        m_ref[...] = jnp.full_like(m_ref, -jnp.inf)
        l_ref[...] = jnp.zeros_like(l_ref)
        acc_ref[...] = jnp.zeros_like(acc_ref)

    # (tq, C) / (tk, C) lane-dense tiles; bf16 operands for the MXU.
    q = q_ref[...].astype(mxu_dtype)
    k = k_ref[...].astype(mxu_dtype)
    v = v_ref[...].astype(mxu_dtype)

    # TODO(synk): for head_dim < 128 the per-head (tq, D) slices under-fill the
    # MXU lane groups of QK^T; only worth head-packing if a profile shows the
    # MXU (not EUP/spill) as the binding slot.
    for h in range(num_heads):                      # static lane slices per head
        sl = slice(h * head_dim, (h + 1) * head_dim)
        qh = q[:, sl]
        kh = k[:, sl]
        vh = v[:, sl]
        # scores: contract last dims (no k transpose materialized); f32 accum.
        s = lax.dot_general(qh, kh, (((1,), (1,)), ((), ())),
                            preferred_element_type=jnp.float32)       # (tq, tk)
        m_prev = m_ref[:, h:h + 1]                                     # (tq, 1)
        m_new = jnp.maximum(m_prev, jnp.max(s, axis=-1, keepdims=True))
        alpha = jnp.exp(m_prev - m_new)                                # (tq, 1)
        p = jnp.exp(s - m_new)                                         # (tq, tk)
        l_ref[:, h:h + 1] = alpha * l_ref[:, h:h + 1] + jnp.sum(p, axis=-1,
                                                                keepdims=True)
        acc_ref[h] = alpha * acc_ref[h] + lax.dot_general(
            p.astype(mxu_dtype), vh, (((1,), (0,)), ((), ())),
            preferred_element_type=jnp.float32)                       # (tq, D)
        m_ref[:, h:h + 1] = m_new

    @pl.when(ki == pl.num_programs(2) - 1)
    def _():
        # attn_drop(p=0.0) is identity; normalize only at the output (tq*D work)
        # and emit one lane-dense (tq, H*D) = (tq, C) block.
        outs = []
        for h in range(num_heads):
            inv_l = pl.reciprocal(l_ref[:, h:h + 1], approx=True)  # EUP slot
            outs.append((acc_ref[h] * inv_l).astype(o_ref.dtype))
        o_ref[...] = jnp.concatenate(outs, axis=-1)


def attention_core(q, k, v, num_heads, *, tq_target=128, tk_target=256):
    """q, k, v: (B, N, C) with the softmax scale pre-folded -> (B, N, C)."""
    B, N, C = q.shape
    H = num_heads
    D = C // H

    tq = _pick_tile(N, tq_target, 8)
    # Keep the parallel grid extent >= 2 when possible (v7x has 2 TensorCores).
    if B * (N // tq) < 2 and tq > 8:
        tq2 = _pick_tile(N, max(8, tq // 2), 8)
        if N // tq2 >= 2:
            tq = tq2
    tk = _pick_tile(N, tk_target, 128)   # lane dim of the (tq, tk) score tile
    grid = (B, N // tq, N // tk)

    mxu_dtype = jnp.bfloat16 if q.dtype == jnp.float32 else q.dtype
    kernel = functools.partial(_attn_kernel, num_heads=H, head_dim=D,
                               mxu_dtype=mxu_dtype)

    q_spec = pl.BlockSpec((pl.Squeezed(), tq, C), lambda b, qi, ki: (b, qi, 0))
    kv_spec = pl.BlockSpec((pl.Squeezed(), tk, C), lambda b, qi, ki: (b, ki, 0))
    o_spec = pl.BlockSpec((pl.Squeezed(), tq, C), lambda b, qi, ki: (b, qi, 0))

    return pl.pallas_call(
        kernel,
        out_shape=jax.ShapeDtypeStruct((B, N, C), q.dtype),
        grid=grid,
        in_specs=[q_spec, kv_spec, kv_spec],
        out_specs=o_spec,
        scratch_shapes=[
            pltpu.VMEM((tq, H), jnp.float32),     # m: running row max (lane h)
            pltpu.VMEM((tq, H), jnp.float32),     # l: running denominator
            pltpu.VMEM((H, tq, D), jnp.float32),  # acc: unnormalized output
        ],
        compiler_params=pltpu.CompilerParams(
            dimension_semantics=("parallel", "parallel", "arbitrary"),
            vmem_limit_bytes=_vmem_limit_bytes()),
    )(q, k, v)


# ---------------------------------------------------------------------------
# Full module forward (3 pallas_calls: fused qkv, fused MHA, proj linear).
# ---------------------------------------------------------------------------
def attention_forward(x, params, num_heads):
    B, N, C = x.shape
    H = num_heads
    assert C % H == 0, "dim should be divisible by num_heads"
    D = C // H
    scale = D ** (-0.5)
    cdt = jnp.bfloat16          # MXU operand dtype; accumulation stays f32

    w_qkv = params["w_qkv"]
    # Fold the softmax scale into the q-projection columns (weight-side, tiny)
    # instead of rescaling the resident q tile on every kv iteration.
    wq = (w_qkv[:, :C] * scale).astype(cdt)
    wk = w_qkv[:, C:2 * C].astype(cdt)
    wv = w_qkv[:, 2 * C:].astype(cdt)

    # qkv linear (qkv_bias=False -> no bias); x streamed once, three outputs.
    x2d = x.reshape(B * N, C).astype(cdt)
    q, k, v = qkv_linear(x2d, wq, wk, wv, out_dtype=cdt)     # each (B*N, C) bf16

    # fused multi-head flash attention (attn_drop p=0.0 -> identity)
    o = attention_core(q.reshape(B, N, C), k.reshape(B, N, C),
                       v.reshape(B, N, C), H)                 # (B, N, C) bf16

    # output projection (proj_drop p=0.0 -> identity); result back in x.dtype.
    out = linear(o.reshape(B * N, C), params["w_proj"].astype(cdt),
                 params["b_proj"], out_dtype=x.dtype)
    return out.reshape(B, N, C)


def init_params(key, dim):
    k1, k2, k3 = jax.random.split(key, 3)
    s = dim ** (-0.5)
    # Weights stored (in, out): y = x @ W  (== x @ W_pt.T in PyTorch terms).
    return {
        "w_qkv": jax.random.normal(k1, (dim, 3 * dim), jnp.float32) * s,
        "w_proj": jax.random.normal(k2, (dim, dim), jnp.float32) * s,
        "b_proj": jax.random.normal(k3, (dim,), jnp.float32) * 0.02,
    }


if __name__ == "__main__":
    B, N, C = 2, 8, 32
    num_heads = 8

    key = jax.random.PRNGKey(0)
    kx, kp = jax.random.split(key)
    x = jax.random.normal(kx, (B, N, C), jnp.float32)
    params = init_params(kp, C)

    out = jax.block_until_ready(attention_forward(x, params, num_heads))

    # Pure-JAX f32 reference of the same math (matches the PyTorch module).
    def ref(x, p):
        H, D = num_heads, C // num_heads
        qkv = (x.reshape(B * N, C) @ p["w_qkv"]).reshape(B, N, 3, H, D)
        qkv = qkv.transpose(2, 0, 3, 1, 4)
        q, k, v = qkv[0], qkv[1], qkv[2]
        s = jnp.einsum("bhqd,bhkd->bhqk", q, k) * (D ** -0.5)
        a = jax.nn.softmax(s, axis=-1)
        o = jnp.einsum("bhqk,bhkd->bhqd", a, v).transpose(0, 2, 1, 3).reshape(B * N, C)
        return (o @ p["w_proj"] + p["b_proj"]).reshape(B, N, C)

    expected = ref(x, params)
    # bf16 MXU operands inside the kernels -> loosened tolerance vs f32 ref.
    assert jnp.allclose(out, expected, atol=5e-2, rtol=5e-2), "mismatch vs reference"

    print("KERNEL_OK")
</pallas_src>

<mosaic_0001>
module attributes {stable_mosaic.version = 11 : i64} {
  func.func @_qkv_kernel(%arg0: i32, %arg1: i32, %arg2: i32, %arg3: memref<16x32xbf16, #tpu.memory_space<vmem>>, %arg4: memref<32x32xbf16, #tpu.memory_space<vmem>>, %arg5: memref<32x32xbf16, #tpu.memory_space<vmem>>, %arg6: memref<32x32xbf16, #tpu.memory_space<vmem>>, %arg7: memref<16x32xbf16, #tpu.memory_space<vmem>>, %arg8: memref<16x32xbf16, #tpu.memory_space<vmem>>, %arg9: memref<16x32xbf16, #tpu.memory_space<vmem>>, %arg10: memref<16x32xf32, #tpu.memory_space<vmem>>, %arg11: memref<16x32xf32, #tpu.memory_space<vmem>>, %arg12: memref<16x32xf32, #tpu.memory_space<vmem>>) attributes {dimension_semantics = [#tpu.dimension_semantics<parallel>, #tpu.dimension_semantics<parallel>, #tpu.dimension_semantics<arbitrary>], iteration_bounds = array<i64: 1, 1, 1>, scalar_prefetch = 0 : i64, scratch_operands = 3 : i64, tpu.core_type = #tpu.core_type<tc>, window_params = [{transform_indices = @transform_0, window_bounds = array<i64: 16, 32>}, {transform_indices = @transform_1, window_bounds = array<i64: 32, 32>}, {transform_indices = @transform_2, window_bounds = array<i64: 32, 32>}, {transform_indices = @transform_3, window_bounds = array<i64: 32, 32>}, {transform_indices = @transform_4, window_bounds = array<i64: 16, 32>}, {transform_indices = @transform_5, window_bounds = array<i64: 16, 32>}, {transform_indices = @transform_6, window_bounds = array<i64: 16, 32>}]} {
    %c0_i32 = arith.constant 0 : i32
    %0 = arith.cmpi eq, %arg2, %c0_i32 : i32
    %1 = arith.extui %0 : i1 to i32
    %c0_i32_0 = arith.constant 0 : i32
    %2 = arith.cmpi ne, %1, %c0_i32_0 : i32
    scf.if %2 {
      %cst_24 = arith.constant 0.000000e+00 : f32
      %22 = vector.broadcast %cst_24 : f32 to vector<16x32xf32>
      %c0_25 = arith.constant 0 : index
      %c0_26 = arith.constant 0 : index
      %23 = vector.load %arg10[%c0_25, %c0_26] : memref<16x32xf32, #tpu.memory_space<vmem>>, vector<16x32xf32>
      tpu.vector_store %arg10[%c0_25, %c0_26], %22 {strides = array<i32>} : memref<16x32xf32, #tpu.memory_space<vmem>>, vector<16x32xf32>,
      %cst_27 = arith.constant 0.000000e+00 : f32
      %24 = vector.broadcast %cst_27 : f32 to vector<16x32xf32>
      %c0_28 = arith.constant 0 : index
      %c0_29 = arith.constant 0 : index
      %25 = vector.load %arg11[%c0_28, %c0_29] : memref<16x32xf32, #tpu.memory_space<vmem>>, vector<16x32xf32>
      tpu.vector_store %arg11[%c0_28, %c0_29], %24 {strides = array<i32>} : memref<16x32xf32, #tpu.memory_space<vmem>>, vector<16x32xf32>,
      %cst_30 = arith.constant 0.000000e+00 : f32
      %26 = vector.broadcast %cst_30 : f32 to vector<16x32xf32>
      %c0_31 = arith.constant 0 : index
      %c0_32 = arith.constant 0 : index
      %27 = vector.load %arg12[%c0_31, %c0_32] : memref<16x32xf32, #tpu.memory_space<vmem>>, vector<16x32xf32>
      tpu.vector_store %arg12[%c0_31, %c0_32], %26 {strides = array<i32>} : memref<16x32xf32, #tpu.memory_space<vmem>>, vector<16x32xf32>,
    } else {
    }
    %c0 = arith.constant 0 : index
    %c0_1 = arith.constant 0 : index
    %3 = vector.load %arg3[%c0, %c0_1] : memref<16x32xbf16, #tpu.memory_space<vmem>>, vector<16x32xbf16>
    %c0_2 = arith.constant 0 : index
    %c0_3 = arith.constant 0 : index
    %4 = vector.load %arg10[%c0_2, %c0_3] : memref<16x32xf32, #tpu.memory_space<vmem>>, vector<16x32xf32>
    %c0_4 = arith.constant 0 : index
    %c0_5 = arith.constant 0 : index
    %5 = vector.load %arg4[%c0_4, %c0_5] : memref<32x32xbf16, #tpu.memory_space<vmem>>, vector<32x32xbf16>
    %cst = arith.constant dense<0.000000e+00> : vector<16x32xf32>
    %6 = tpu.matmul %3, %5, %cst {dimension_numbers = #tpu.dot_dimension_numbers<[1], [0], [0], [1], [0, 0, 1, 1], [], []>} : vector<16x32xbf16>, vector<32x32xbf16>, vector<16x32xf32> -> vector<16x32xf32>
    %7 = arith.addf %4, %6 : vector<16x32xf32>
    %c0_6 = arith.constant 0 : index
    %c0_7 = arith.constant 0 : index
    %8 = vector.load %arg10[%c0_6, %c0_7] : memref<16x32xf32, #tpu.memory_space<vmem>>, vector<16x32xf32>
    tpu.vector_store %arg10[%c0_6, %c0_7], %7 {strides = array<i32>} : memref<16x32xf32, #tpu.memory_space<vmem>>, vector<16x32xf32>,
    %c0_8 = arith.constant 0 : index
    %c0_9 = arith.constant 0 : index
    %9 = vector.load %arg11[%c0_8, %c0_9] : memref<16x32xf32, #tpu.memory_space<vmem>>, vector<16x32xf32>
    %c0_10 = arith.constant 0 : index
    %c0_11 = arith.constant 0 : index
    %10 = vector.load %arg5[%c0_10, %c0_11] : memref<32x32xbf16, #tpu.memory_space<vmem>>, vector<32x32xbf16>
    %cst_12 = arith.constant dense<0.000000e+00> : vector<16x32xf32>
    %11 = tpu.matmul %3, %10, %cst_12 {dimension_numbers = #tpu.dot_dimension_numbers<[1], [0], [0], [1], [0, 0, 1, 1], [], []>} : vector<16x32xbf16>, vector<32x32xbf16>, vector<16x32xf32> -> vector<16x32xf32>
    %12 = arith.addf %9, %11 : vector<16x32xf32>
    %c0_13 = arith.constant 0 : index
    %c0_14 = arith.constant 0 : index
    %13 = vector.load %arg11[%c0_13, %c0_14] : memref<16x32xf32, #tpu.memory_space<vmem>>, vector<16x32xf32>
    tpu.vector_store %arg11[%c0_13, %c0_14], %12 {strides = array<i32>} : memref<16x32xf32, #tpu.memory_space<vmem>>, vector<16x32xf32>,
    %c0_15 = arith.constant 0 : index
    %c0_16 = arith.constant 0 : index
    %14 = vector.load %arg12[%c0_15, %c0_16] : memref<16x32xf32, #tpu.memory_space<vmem>>, vector<16x32xf32>
    %c0_17 = arith.constant 0 : index
    %c0_18 = arith.constant 0 : index
    %15 = vector.load %arg6[%c0_17, %c0_18] : memref<32x32xbf16, #tpu.memory_space<vmem>>, vector<32x32xbf16>
    %cst_19 = arith.constant dense<0.000000e+00> : vector<16x32xf32>
    %16 = tpu.matmul %3, %15, %cst_19 {dimension_numbers = #tpu.dot_dimension_numbers<[1], [0], [0], [1], [0, 0, 1, 1], [], []>} : vector<16x32xbf16>, vector<32x32xbf16>, vector<16x32xf32> -> vector<16x32xf32>
    %17 = arith.addf %14, %16 : vector<16x32xf32>
    %c0_20 = arith.constant 0 : index
    %c0_21 = arith.constant 0 : index
    %18 = vector.load %arg12[%c0_20, %c0_21] : memref<16x32xf32, #tpu.memory_space<vmem>>, vector<16x32xf32>
    tpu.vector_store %arg12[%c0_20, %c0_21], %17 {strides = array<i32>} : memref<16x32xf32, #tpu.memory_space<vmem>>, vector<16x32xf32>,
    %c0_i32_22 = arith.constant 0 : i32
    %19 = arith.cmpi eq, %arg2, %c0_i32_22 : i32
    %20 = arith.extui %19 : i1 to i32
    %c0_i32_23 = arith.constant 0 : i32
    %21 = arith.cmpi ne, %20, %c0_i32_23 : i32
    scf.if %21 {
      %c0_24 = arith.constant 0 : index
      %c0_25 = arith.constant 0 : index
      %22 = vector.load %arg10[%c0_24, %c0_25] : memref<16x32xf32, #tpu.memory_space<vmem>>, vector<16x32xf32>
      %23 = arith.truncf %22 : vector<16x32xf32> to vector<16x32xbf16>
      %c0_26 = arith.constant 0 : index
      %c0_27 = arith.constant 0 : index
      %24 = vector.load %arg7[%c0_26, %c0_27] : memref<16x32xbf16, #tpu.memory_space<vmem>>, vector<16x32xbf16>
      tpu.vector_store %arg7[%c0_26, %c0_27], %23 {strides = array<i32>} : memref<16x32xbf16, #tpu.memory_space<vmem>>, vector<16x32xbf16>,
      %c0_28 = arith.constant 0 : index
      %c0_29 = arith.constant 0 : index
      %25 = vector.load %arg11[%c0_28, %c0_29] : memref<16x32xf32, #tpu.memory_space<vmem>>, vector<16x32xf32>
      %26 = arith.truncf %25 : vector<16x32xf32> to vector<16x32xbf16>
      %c0_30 = arith.constant 0 : index
      %c0_31 = arith.constant 0 : index
      %27 = vector.load %arg8[%c0_30, %c0_31] : memref<16x32xbf16, #tpu.memory_space<vmem>>, vector<16x32xbf16>
      tpu.vector_store %arg8[%c0_30, %c0_31], %26 {strides = array<i32>} : memref<16x32xbf16, #tpu.memory_space<vmem>>, vector<16x32xbf16>,
      %c0_32 = arith.constant 0 : index
      %c0_33 = arith.constant 0 : index
      %28 = vector.load %arg12[%c0_32, %c0_33] : memref<16x32xf32, #tpu.memory_space<vmem>>, vector<16x32xf32>
      %29 = arith.truncf %28 : vector<16x32xf32> to vector<16x32xbf16>
      %c0_34 = arith.constant 0 : index
      %c0_35 = arith.constant 0 : index
      %30 = vector.load %arg9[%c0_34, %c0_35] : memref<16x32xbf16, #tpu.memory_space<vmem>>, vector<16x32xbf16>
      tpu.vector_store %arg9[%c0_34, %c0_35], %29 {strides = array<i32>} : memref<16x32xbf16, #tpu.memory_space<vmem>>, vector<16x32xbf16>,
    } else {
    }
    return
  }
  func.func @transform_0(%arg0: i32, %arg1: i32, %arg2: i32) -> (i32, i32) {
    %c0_i32 = arith.constant 0 : i32
    return %arg0, %arg2 : i32, i32
  }
  func.func @transform_1(%arg0: i32, %arg1: i32, %arg2: i32) -> (i32, i32) {
    %c0_i32 = arith.constant 0 : i32
    return %arg2, %arg1 : i32, i32
  }
  func.func @transform_2(%arg0: i32, %arg1: i32, %arg2: i32) -> (i32, i32) {
    %c0_i32 = arith.constant 0 : i32
    return %arg2, %arg1 : i32, i32
  }
  func.func @transform_3(%arg0: i32, %arg1: i32, %arg2: i32) -> (i32, i32) {
    %c0_i32 = arith.constant 0 : i32
    return %arg2, %arg1 : i32, i32
  }
  func.func @transform_4(%arg0: i32, %arg1: i32, %arg2: i32) -> (i32, i32) {
    %c0_i32 = arith.constant 0 : i32
    return %arg0, %arg1 : i32, i32
  }
  func.func @transform_5(%arg0: i32, %arg1: i32, %arg2: i32) -> (i32, i32) {
    %c0_i32 = arith.constant 0 : i32
    return %arg0, %arg1 : i32, i32
  }
  func.func @transform_6(%arg0: i32, %arg1: i32, %arg2: i32) -> (i32, i32) {
    %c0_i32 = arith.constant 0 : i32
    return %arg0, %arg1 : i32, i32
  }
}

</mosaic_0001>

<llo_original>
// kernel: tpu_custom_call.1
$region0: #{tpu_custom_call.1}
  #allocation0 [shape = 'u32[]', space=smem, size = 0x4, offset = 0x4, fixed_abs, tag = 'smem constant byte address 0x4 - core index']
  #allocation1 [shape = 'u32[72,128]{1,0:T(1,128)}', space=vmem, size = 0x9000, scoped, tag = 'internal scratch']
  #allocation2 [shape = 'f32[16,32]{1,0:T(8,128)}', space=vmem, size = 0x2000, scoped, tag = 'scratch operand']
  #allocation3 [shape = 'f32[16,32]{1,0:T(8,128)}', space=vmem, size = 0x2000, scoped, tag = 'scratch operand']
  #allocation4 [shape = 'f32[16,32]{1,0:T(8,128)}', space=vmem, size = 0x2000, scoped, tag = 'scratch operand']
  %s0 = inlined_call_operand.hbm [shape: bf16[16,32], index: 0, kind: input, shape index: {}]
  %s1 = inlined_call_operand.hbm [shape: bf16[32,32], index: 1, kind: input, shape index: {}]
  %s2 = inlined_call_operand.hbm [shape: bf16[32,32], index: 2, kind: input, shape index: {}]
  %s3 = inlined_call_operand.hbm [shape: bf16[32,32], index: 3, kind: input, shape index: {}]
  %s4 = inlined_call_operand.hbm [shape: bf16[16,32], index: 4, kind: output, shape index: {0}]
  %s5 = inlined_call_operand.hbm [shape: bf16[16,32], index: 5, kind: output, shape index: {1}]
  %s6 = inlined_call_operand.hbm [shape: bf16[16,32], index: 6, kind: output, shape index: {2}]
  %7 = xla_tuple %s4, %s5, %s6
  %s8 = sld [smem:[#allocation0]]
  $region66: #{tpu_custom_call.1} parent=0
    _
  %s10 = ssub.s32 1, %s8
  %s11 = scalar_select 0, %s10, %s8
  $region1: #{tpu_custom_call.1} parent=0
    #allocation5 [shape = 'u8[4096]{0}', space=vmem, size = 0x1000, scoped, tag = 'input window, operand 0, single buffered']
    #allocation6 [shape = 's32[1]{0}', space=sflag, size = 0x4, scoped, tag = 'scoped memory for tpu_custom_call.1']
    #allocation7 [shape = 's32[1]{0}', space=sflag, size = 0x4, scoped, tag = 'scoped memory for tpu_custom_call.1']
    #allocation8 [shape = 'u8[8192]{0}', space=vmem, size = 0x2000, scoped, tag = 'input window, operand 1, single buffered']
    #allocation9 [shape = 's32[1]{0}', space=sflag, size = 0x4, scoped, tag = 'scoped memory for tpu_custom_call.1']
    #allocation10 [shape = 'u8[8192]{0}', space=vmem, size = 0x2000, scoped, tag = 'input window, operand 2, single buffered']
    #allocation11 [shape = 'u8[8192]{0}', space=vmem, size = 0x2000, scoped, tag = 'input window, operand 3, single buffered']
    #allocation12 [shape = 's32[1]{0}', space=sflag, size = 0x4, scoped, tag = 'scoped memory for tpu_custom_call.1']
    #allocation13 [shape = 'u8[4096]{0}', space=vmem, size = 0x1000, scoped, tag = 'output window, operand 0, single buffered']
    #allocation14 [shape = 'u8[4096]{0}', space=vmem, size = 0x1000, scoped, tag = 'output window, operand 1, single buffered']
    #allocation15 [shape = 's32[1]{0}', space=sflag, size = 0x4, scoped, tag = 'scoped memory for tpu_custom_call.1']
    #allocation16 [shape = 'u8[4096]{0}', space=vmem, size = 0x1000, scoped, tag = 'output window, operand 2, single buffered']
    %12 = vsyncpa [#allocation6], 0
    %13 = vsyncpa [#allocation9], 0
    %14 = vsyncpa [#allocation12], 0
    %15 = vsyncpa [#allocation7], 0
    %16 = vsyncpa [#allocation15], 0
    // Predicated region
    $region2: #{tpu_custom_call.1} parent=1 // pred_check
      _
    $region3: #{tpu_custom_call.1} parent=1 // pred_check_branch
      %18 = sbr.rel (0) target = $region5
    $region4: #{tpu_custom_call.1} parent=1 // pred_region
      %20 = vsyncadd [#allocation6], 0
      %s21 = sshll.u32 %s0, 4
      %s22 = int_to_ptr.hbm [resolvable:$true] %s21
      %s23 = sshll.u32 [#allocation5], 4
      %s24 = int_to_ptr.vmem [resolvable:$true] %s23
      %29 = dma.hbm_to_vmem [thread:$0]  %s22, 128, %s24, [#allocation6], 64, 64, 4
    $region5: #{tpu_custom_call.1} parent=1 // pred_fallthru
      _
    // Predicated region
    $region6: #{tpu_custom_call.1} parent=1 // pred_check
      _
    $region7: #{tpu_custom_call.1} parent=1 // pred_check_branch
      %31 = sbr.rel (0) target = $region9
    $region8: #{tpu_custom_call.1} parent=1 // pred_region
      %33 = vsyncadd [#allocation9], 0
      %s34 = sshll.u32 %s1, 4
      %s35 = int_to_ptr.hbm [resolvable:$true] %s34
      %s36 = sshll.u32 [#allocation8], 4
      %s37 = int_to_ptr.vmem [resolvable:$true] %s36
      %42 = dma.hbm_to_vmem [thread:$0]  %s35, 256, %s37, [#allocation9], 64, 64, 4
    $region9: #{tpu_custom_call.1} parent=1 // pred_fallthru
      _
    // Predicated region
    $region10: #{tpu_custom_call.1} parent=1 // pred_check
      _
    $region11: #{tpu_custom_call.1} parent=1 // pred_check_branch
      %44 = sbr.rel (0) target = $region13
    $region12: #{tpu_custom_call.1} parent=1 // pred_region
      %46 = vsyncadd [#allocation9], 0
      %s47 = sshll.u32 %s2, 4
      %s48 = int_to_ptr.hbm [resolvable:$true] %s47
      %s49 = sshll.u32 [#allocation10], 4
      %s50 = int_to_ptr.vmem [resolvable:$true] %s49
      %55 = dma.hbm_to_vmem [thread:$0]  %s48, 256, %s50, [#allocation9], 64, 64, 4
    $region13: #{tpu_custom_call.1} parent=1 // pred_fallthru
      _
    // Predicated region
    $region14: #{tpu_custom_call.1} parent=1 // pred_check
      _
    $region15: #{tpu_custom_call.1} parent=1 // pred_check_branch
      %57 = sbr.rel (0) target = $region17
    $region16: #{tpu_custom_call.1} parent=1 // pred_region
      %59 = vsyncadd [#allocation12], 0
      %s60 = sshll.u32 %s3, 4
      %s61 = int_to_ptr.hbm [resolvable:$true] %s60
      %s62 = sshll.u32 [#allocation11], 4
      %s63 = int_to_ptr.vmem [resolvable:$true] %s62
      %68 = dma.hbm_to_vmem [thread:$0]  %s61, 256, %s63, [#allocation12], 64, 64, 4
    $region17: #{tpu_custom_call.1} parent=1 // pred_fallthru
      _
    // Predicated region
    $region18: #{tpu_custom_call.1} parent=1 // pred_check
      _
    $region19: #{tpu_custom_call.1} parent=1 // pred_check_branch
      %70 = sbr.rel (0) target = $region21
    $region20: #{tpu_custom_call.1} parent=1 // pred_region
      %72 = dma.done [#allocation6], 128
    $region21: #{tpu_custom_call.1} parent=1 // pred_fallthru
      _
    // Predicated region
    $region22: #{tpu_custom_call.1} parent=1 // pred_check
      _
    $region23: #{tpu_custom_call.1} parent=1 // pred_check_branch
      %74 = sbr.rel (0) target = $region25
    $region24: #{tpu_custom_call.1} parent=1 // pred_region
      %76 = dma.done [#allocation9], 256
    $region25: #{tpu_custom_call.1} parent=1 // pred_fallthru
      _
    // Predicated region
    $region26: #{tpu_custom_call.1} parent=1 // pred_check
      _
    $region27: #{tpu_custom_call.1} parent=1 // pred_check_branch
      %78 = sbr.rel (0) target = $region29
    $region28: #{tpu_custom_call.1} parent=1 // pred_region
      %80 = dma.done [#allocation9], 256
    $region29: #{tpu_custom_call.1} parent=1 // pred_fallthru
      _
    // Predicated region
    $region30: #{tpu_custom_call.1} parent=1 // pred_check
      _
    $region31: #{tpu_custom_call.1} parent=1 // pred_check_branch
      %82 = sbr.rel (0) target = $region33
    $region32: #{tpu_custom_call.1} parent=1 // pred_region
      %84 = dma.done [#allocation12], 256
    $region33: #{tpu_custom_call.1} parent=1 // pred_fallthru
      _
    %p86 = scmp.eq.s32.totalorder 0, 0
    // Predicated region
    $region34: #{tpu_custom_call.1} parent=1 // pred_check
      %p87 = pneg %p86
    $region35: #{tpu_custom_call.1} parent=1 // pred_check_branch
      %89 = sbr.rel (%p87) target = $region37
    $region36: #{tpu_custom_call.1} parent=1 // pred_region
      %vm90 = vcmask 261120
      %91 = vst.msk [vmem:[#allocation2] sm:$0xff] %vm90, 0.0
      %92 = vst.msk [vmem:[#allocation2 + $0x8] sm:$0xff] %vm90, 0.0
      %93 = vst.msk [vmem:[#allocation3] sm:$0xff] %vm90, 0.0
      %94 = vst.msk [vmem:[#allocation3 + $0x8] sm:$0xff] %vm90, 0.0
      %95 = vst.msk [vmem:[#allocation4] sm:$0xff] %vm90, 0.0
      %96 = vst.msk [vmem:[#allocation4 + $0x8] sm:$0xff] %vm90, 0.0
    $region37: #{tpu_custom_call.1} parent=1 // pred_fallthru
      _
    %v97 = vld [vmem:[#allocation5] sm:$0xf]
    %v98 = vld [vmem:[#allocation5 + $0x4] sm:$0xf]
    %v99 = vld [vmem:[#allocation2] sm:$0xff]
    %v100 = vld [vmem:[#allocation2 + $0x8] sm:$0xff]
    %v101 = vld [vmem:[#allocation8] sm:$0xf]
    %v102 = vld [vmem:[#allocation8 + $0x4] sm:$0xf]
    %v103 = vld [vmem:[#allocation8 + $0x8] sm:$0xf]
    %v104 = vld [vmem:[#allocation8 + $0xc] sm:$0xf]
    %v107 = vunpack.c.l.b16 %v97
    %v108 = vunpack.c.l.b16 %v98
    %v109 = vpack.c.b16 %v108, %v107
    %v114 = vunpack.c.l.b16 %v101
    %v115 = vunpack.c.l.b16 %v102
    %v116 = vunpack.c.l.b16 %v103
    %v117 = vunpack.c.l.b16 %v104
    %v118 = vpack.c.b16 %v115, %v114
    %v119 = vpack.c.b16 %v117, %v116
    %vm122 = vcmask 261120
    %v124 = vsel %vm122, %v109, 0
    %126 = vmatpush.bf16.msra.mxu0 0
    %127 = vmatpush.bf16.msra.mxu0 0
    %128 = vmatpush.bf16.msra.mxu0 0
    %129 = vmatpush.bf16.msra.mxu0 0
    %130 = vmatpush.bf16.msra.mxu0 0
    %131 = vmatpush.bf16.msra.mxu0 0
    %132 = vmatpush.bf16.msra.mxu0 %v119
    %133 = vmatpush.bf16.msra.mxu0 %v118
    %134 = vmatmul.bf16.gmra.mxu0 %v124
    %v135 = vpop.f32.mrf.mxu0
    %v136 = vadd.f32 0.0, %v135
    %v137 = vpop.f32.mrf.mxu0
    %v138 = vadd.f32 0.0, %v137
    %139 = vdwg.mxu0
    %v140 = vadd.f32 %v99, %v136
    %v141 = vadd.f32 %v100, %v138
    %142 = vst.msk [vmem:[#allocation2] sm:$0xff] %vm122, %v140
    %143 = vst.msk [vmem:[#allocation2 + $0x8] sm:$0xff] %vm122, %v141
    %v144 = vld [vmem:[#allocation3] sm:$0xff]
    %v145 = vld [vmem:[#allocation3 + $0x8] sm:$0xff]
    %v146 = vld [vmem:[#allocation10] sm:$0xf]
    %v147 = vld [vmem:[#allocation10 + $0x4] sm:$0xf]
    %v148 = vld [vmem:[#allocation10 + $0x8] sm:$0xf]
    %v149 = vld [vmem:[#allocation10 + $0xc] sm:$0xf]
    %v154 = vunpack.c.l.b16 %v146
    %v155 = vunpack.c.l.b16 %v147
    %v156 = vunpack.c.l.b16 %v148
    %v157 = vunpack.c.l.b16 %v149
    %v158 = vpack.c.b16 %v155, %v154
    %v159 = vpack.c.b16 %v157, %v156
    %162 = vmatpush.bf16.msra.mxu0 0
    %163 = vmatpush.bf16.msra.mxu0 0
    %164 = vmatpush.bf16.msra.mxu0 0
    %165 = vmatpush.bf16.msra.mxu0 0
    %166 = vmatpush.bf16.msra.mxu0 0
    %167 = vmatpush.bf16.msra.mxu0 0
    %168 = vmatpush.bf16.msra.mxu0 %v159
    %169 = vmatpush.bf16.msra.mxu0 %v158
    %170 = vmatmul.bf16.gmra.mxu0 %v124
    %v171 = vpop.f32.mrf.mxu0
    %v172 = vadd.f32 0.0, %v171
    %v173 = vpop.f32.mrf.mxu0
    %v174 = vadd.f32 0.0, %v173
    %175 = vdwg.mxu0
    %v176 = vadd.f32 %v144, %v172
    %v177 = vadd.f32 %v145, %v174
    %178 = vst.msk [vmem:[#allocation3] sm:$0xff] %vm122, %v176
    %179 = vst.msk [vmem:[#allocation3 + $0x8] sm:$0xff] %vm122, %v177
    %v180 = vld [vmem:[#allocation4] sm:$0xff]
    %v181 = vld [vmem:[#allocation4 + $0x8] sm:$0xff]
    %v182 = vld [vmem:[#allocation11] sm:$0xf]
    %v183 = vld [vmem:[#allocation11 + $0x4] sm:$0xf]
    %v184 = vld [vmem:[#allocation11 + $0x8] sm:$0xf]
    %v185 = vld [vmem:[#allocation11 + $0xc] sm:$0xf]
    %v190 = vunpack.c.l.b16 %v182
    %v191 = vunpack.c.l.b16 %v183
    %v192 = vunpack.c.l.b16 %v184
    %v193 = vunpack.c.l.b16 %v185
    %v194 = vpack.c.b16 %v191, %v190
    %v195 = vpack.c.b16 %v193, %v192
    %198 = vmatpush.bf16.msra.mxu0 0
    %199 = vmatpush.bf16.msra.mxu0 0
    %200 = vmatpush.bf16.msra.mxu0 0
    %201 = vmatpush.bf16.msra.mxu0 0
    %202 = vmatpush.bf16.msra.mxu0 0
    %203 = vmatpush.bf16.msra.mxu0 0
    %204 = vmatpush.bf16.msra.mxu0 %v195
    %205 = vmatpush.bf16.msra.mxu0 %v194
    %206 = vmatmul.bf16.gmra.mxu0 %v124
    %v207 = vpop.f32.mrf.mxu0
    %v208 = vadd.f32 0.0, %v207
    %v209 = vpop.f32.mrf.mxu0
    %v210 = vadd.f32 0.0, %v209
    %211 = vdwg.mxu0
    %v212 = vadd.f32 %v180, %v208
    %v213 = vadd.f32 %v181, %v210
    %214 = vst.msk [vmem:[#allocation4] sm:$0xff] %vm122, %v212
    %215 = vst.msk [vmem:[#allocation4 + $0x8] sm:$0xff] %vm122, %v213
    // Predicated region
    $region38: #{tpu_custom_call.1} parent=1 // pred_check
      %p216 = pneg %p86
    $region39: #{tpu_custom_call.1} parent=1 // pred_check_branch
      %218 = sbr.rel (%p216) target = $region41
    $region40: #{tpu_custom_call.1} parent=1 // pred_region
      %v219 = vld [vmem:[#allocation2] sm:$0xff]
      %v220 = vld [vmem:[#allocation2 + $0x8] sm:$0xff]
      %v221 = vpack.c.bf16 %v219, %v219
      %v222 = vpack.c.bf16 %v220, %v220
      %vm223 = vcmask 257024
      %224 = vst.msk [vmem:[#allocation13] sm:$0xf] %vm223, %v221
      %225 = vst.msk [vmem:[#allocation13 + $0x4] sm:$0xf] %vm223, %v222
      %v226 = vld [vmem:[#allocation3] sm:$0xff]
      %v227 = vld [vmem:[#allocation3 + $0x8] sm:$0xff]
      %v228 = vpack.c.bf16 %v226, %v226
      %v229 = vpack.c.bf16 %v227, %v227
      %230 = vst.msk [vmem:[#allocation14] sm:$0xf] %vm223, %v228
      %231 = vst.msk [vmem:[#allocation14 + $0x4] sm:$0xf] %vm223, %v229
      %v232 = vld [vmem:[#allocation4] sm:$0xff]
      %v233 = vld [vmem:[#allocation4 + $0x8] sm:$0xff]
      %v234 = vpack.c.bf16 %v232, %v232
      %v235 = vpack.c.bf16 %v233, %v233
      %236 = vst.msk [vmem:[#allocation16] sm:$0xf] %vm223, %v234
      %237 = vst.msk [vmem:[#allocation16 + $0x4] sm:$0xf] %vm223, %v235
    $region41: #{tpu_custom_call.1} parent=1 // pred_fallthru
      _
    // Predicated region
    $region42: #{tpu_custom_call.1} parent=1 // pred_check
      _
    $region43: #{tpu_custom_call.1} parent=1 // pred_check_branch
      %239 = sbr.rel (0) target = $region45
    $region44: #{tpu_custom_call.1} parent=1 // pred_region
      %241 = vsyncadd [#allocation7], 0
      %s242 = sshll.u32 [#allocation13], 4
      %s243 = int_to_ptr.vmem [resolvable:$true] %s242
      %s244 = sshll.u32 %s4, 4
      %s245 = int_to_ptr.hbm [resolvable:$true] %s244
      %250 = dma.vmem_to_hbm [thread:$0]  %s243, 128, %s245, [#allocation7], 64, 64, 4
    $region45: #{tpu_custom_call.1} parent=1 // pred_fallthru
      _
    // Predicated region
    $region46: #{tpu_custom_call.1} parent=1 // pred_check
      _
    $region47: #{tpu_custom_call.1} parent=1 // pred_check_branch
      %252 = sbr.rel (0) target = $region49
    $region48: #{tpu_custom_call.1} parent=1 // pred_region
      %254 = vsyncadd [#allocation15], 0
      %s255 = sshll.u32 [#allocation14], 4
      %s256 = int_to_ptr.vmem [resolvable:$true] %s255
      %s257 = sshll.u32 %s5, 4
      %s258 = int_to_ptr.hbm [resolvable:$true] %s257
      %263 = dma.vmem_to_hbm [thread:$0]  %s256, 128, %s258, [#allocation15], 64, 64, 4
    $region49: #{tpu_custom_call.1} parent=1 // pred_fallthru
      _
    // Predicated region
    $region50: #{tpu_custom_call.1} parent=1 // pred_check
      _
    $region51: #{tpu_custom_call.1} parent=1 // pred_check_branch
      %265 = sbr.rel (0) target = $region53
    $region52: #{tpu_custom_call.1} parent=1 // pred_region
      %267 = vsyncadd [#allocation15], 0
      %s268 = sshll.u32 [#allocation16], 4
      %s269 = int_to_ptr.vmem [resolvable:$true] %s268
      %s270 = sshll.u32 %s6, 4
      %s271 = int_to_ptr.hbm [resolvable:$true] %s270
      %276 = dma.vmem_to_hbm [thread:$0]  %s269, 128, %s271, [#allocation15], 64, 64, 4
    $region53: #{tpu_custom_call.1} parent=1 // pred_fallthru
      _
    // Predicated region
    $region54: #{tpu_custom_call.1} parent=1 // pred_check
      _
    $region55: #{tpu_custom_call.1} parent=1 // pred_check_branch
      %278 = sbr.rel (0) target = $region57
    $region56: #{tpu_custom_call.1} parent=1 // pred_region
      %280 = dma.done [#allocation7], 128
    $region57: #{tpu_custom_call.1} parent=1 // pred_fallthru
      _
    // Predicated region
    $region58: #{tpu_custom_call.1} parent=1 // pred_check
      _
    $region59: #{tpu_custom_call.1} parent=1 // pred_check_branch
      %282 = sbr.rel (0) target = $region61
    $region60: #{tpu_custom_call.1} parent=1 // pred_region
      %284 = dma.done [#allocation15], 128
    $region61: #{tpu_custom_call.1} parent=1 // pred_fallthru
      _
    // Predicated region
    $region62: #{tpu_custom_call.1} parent=1 // pred_check
      _
    $region63: #{tpu_custom_call.1} parent=1 // pred_check_branch
      %286 = sbr.rel (0) target = $region65
    $region64: #{tpu_custom_call.1} parent=1 // pred_region
      %288 = dma.done [#allocation15], 128
    $region65: #{tpu_custom_call.1} parent=1 // pred_fallthru
      _
    %289 = vsyncpa [#allocation6], 1
    %290 = vsyncpa [#allocation9], 1
    %291 = vsyncpa [#allocation12], 1
    %292 = vsyncpa [#allocation7], 1
    %293 = vsyncpa [#allocation15], 1

</llo_original>
